<compile_context>
chip_gen: v7x
topology: tpu7x:2x2x1
jax: 0.10.0
libtpu: 0.0.40
codegen_flags: <defaults>
</compile_context>

<pallas_src>
import functools

import jax
import jax.numpy as jnp
import numpy as np
from jax.experimental import pallas as pl
from jax.experimental.pallas import tpu as pltpu


def _relu_conv_block_kernel(x_ref, w1_ref, b1_ref, w2_ref, b2_ref, out_ref, mid_ref,
                            *, stride, use_act):
    # x_ref  : (NB, H+2, Cin*W)        H-pre-padded input rows (c-major, x-minor)
    # w1_ref : (3*Cin*W,   Cmid*W1)    K-folded banded conv1 weights
    # b1_ref : (1, Cmid*W1)
    # w2_ref : (3*Cmid*W1, Cout*W1)    K-folded banded conv2 weights
    # b2_ref : (1, Cout*W1)
    # out_ref: (NB, H1, Cout*W1)
    # mid_ref: (NB, H1+2, Cmid*W1)     VMEM scratch holding the padded intermediate
    nb, _, k1 = x_ref.shape
    h1 = out_ref.shape[1]
    n1 = w1_ref.shape[1]
    n2 = w2_ref.shape[1]
    f32 = jnp.float32

    def shifted_rows(src, k, s):
        # Three vertically shifted row views of a (NB, rows, k) slab, concatenated
        # along the lane axis (the K-fold), then flattened to matmul-M rows.
        if s == 1:
            views = [src[:, t:t + h1, :] for t in range(3)]
        else:
            # TODO(synk): for stride>1 pre-decimate rows in the wrapper to avoid the
            # strided sublane slice inside the kernel (stride=1 path used by the test).
            views = [jax.lax.slice(src, (0, t, 0),
                                   (nb, t + s * (h1 - 1) + 1, k), (1, s, 1))
                     for t in range(3)]
        return jnp.concatenate(views, axis=-1).reshape(nb * h1, 3 * k)

    # ---- conv1: single MXU matmul over the K-folded taps, f32 bias+tanh epilogue ----
    x = x_ref[...]                                          # (NB, H+2, Cin*W)
    lhs1 = shifted_rows(x, k1, stride)                      # (NB*H1, 3*Cin*W)
    h = jnp.tanh(jnp.dot(lhs1, w1_ref[...], preferred_element_type=f32)
                 + b1_ref[...])                             # (NB*H1, Cmid*W1), f32

    # Store the intermediate once into the persistent padded scratch.  Halo rows are
    # zeroed every step (cheap) so correctness does not depend on grid-step 0 running
    # on this core under megacore sharding.
    mid_ref[:, 0:1, :] = jnp.zeros((nb, 1, n1), mid_ref.dtype)
    mid_ref[:, h1 + 1:h1 + 2, :] = jnp.zeros((nb, 1, n1), mid_ref.dtype)
    mid_ref[:, 1:h1 + 1, :] = h.reshape(nb, h1, n1).astype(mid_ref.dtype)

    # ---- conv2 (stride 1, padding 1): single MXU matmul from the padded scratch ----
    mid = mid_ref[...]                                      # (NB, H1+2, Cmid*W1)
    lhs2 = shifted_rows(mid, n1, 1)                         # (NB*H1, 3*Cmid*W1)
    y = jnp.dot(lhs2, w2_ref[...], preferred_element_type=f32) + b2_ref[...]
    if use_act:
        y = jnp.tanh(y)
    out_ref[...] = y.reshape(nb, h1, n2).astype(out_ref.dtype)


def _banded_from_hwio(w_hwio, w_in, w_out, stride):
    """Fold the 3 horizontal taps + W padding=1 of a 3x3 conv into a matmul.

    w_hwio: (3, 3, Ci, Co).  Returns (3, Ci*w_in, Co*w_out) float32 where slab t maps an
    un-padded input row (c-major, x-minor) to an output row (c-major, x-minor).
    Out-of-range horizontal taps are dropped (== zero padding).
    """
    kh, kw, ci, co = w_hwio.shape
    sel = np.zeros((kw, w_in, w_out), np.float32)
    for dx in range(kw):
        for xo in range(w_out):
            xi = xo * stride + dx - 1  # padding = 1
            if 0 <= xi < w_in:
                sel[dx, xi, xo] = 1.0
    b = jnp.einsum("tdio,dxy->tixoy", w_hwio.astype(jnp.float32), jnp.asarray(sel))
    return b.reshape(kh, ci * w_in, co * w_out)


def _pick_images_per_block(n, h1, target_m=256):
    """Pick images per grid step so M = nb*H1 ~ target_m (MXU row fill).

    Collapses the grid when N is small (one step beats serial under-filled pushes on
    1-TC chips); keeps >=2 steps only when each step still reaches the target fill
    (feeds both v7x TensorCores for free).  Result always divides n.
    """
    want = max(1, target_m // max(h1, 1))
    divs = [d for d in range(1, n + 1) if n % d == 0]
    fit = [d for d in divs if d <= want]
    best = max(fit) if fit else 1
    if best == n and n > 1:
        alt = [d for d in divs if d < n and d * h1 >= target_m]
        if alt:
            best = min(alt)
    return best


def relu_conv_block(x_nchw, w1_hwio, b1, w2_hwio, b2, *, stride=1, use_act=True,
                    images_per_block=None, compute_dtype=None, vmem_limit_bytes=None):
    """Pallas ReluConvBlock.forward.  x_nchw: (N, Cin, H, W); weights HWIO."""
    N, Cin, H, W = x_nchw.shape
    Cmid = w1_hwio.shape[3]
    Cout = w2_hwio.shape[3]
    H1 = (H + 2 - 3) // stride + 1
    W1 = (W + 2 - 3) // stride + 1

    cdt = compute_dtype or x_nchw.dtype  # jnp.bfloat16 recommended on v6e/v7x

    # NCHW -> per-row (c, x) layout with the H halo pre-padded: (N, H+2, Cin*W).
    # Lane axis (W) is never transposed; halo rows arrive via the normal input DMA.
    x_rows = jnp.transpose(x_nchw, (0, 2, 1, 3)).reshape(N, H, Cin * W)
    x_rows = jnp.pad(x_rows, ((0, 0), (1, 1), (0, 0))).astype(cdt)

    # K-folded banded weights: (3, K, N) -> (3K, N); row order matches the kernel's
    # lane-concat of [tap0 | tap1 | tap2].
    B1 = _banded_from_hwio(w1_hwio, W, W1, stride).reshape(3 * Cin * W, Cmid * W1).astype(cdt)
    B2 = _banded_from_hwio(w2_hwio, W1, W1, 1).reshape(3 * Cmid * W1, Cout * W1).astype(cdt)
    b1_row = jnp.repeat(b1.astype(jnp.float32), W1).reshape(1, Cmid * W1)
    b2_row = jnp.repeat(b2.astype(jnp.float32), W1).reshape(1, Cout * W1)

    nb = images_per_block or _pick_images_per_block(N, H1)
    assert N % nb == 0
    grid = (N // nb,)

    kernel = functools.partial(_relu_conv_block_kernel, stride=stride, use_act=use_act)

    out_rows = pl.pallas_call(
        kernel,
        out_shape=jax.ShapeDtypeStruct((N, H1, Cout * W1), x_nchw.dtype),
        grid_spec=pltpu.PrefetchScalarGridSpec(
            num_scalar_prefetch=0,
            grid=grid,
            in_specs=[
                pl.BlockSpec((nb, H + 2, Cin * W), lambda i: (i, 0, 0)),
                pl.BlockSpec((3 * Cin * W, Cmid * W1), lambda i: (0, 0)),
                pl.BlockSpec((1, Cmid * W1), lambda i: (0, 0)),
                pl.BlockSpec((3 * Cmid * W1, Cout * W1), lambda i: (0, 0)),
                pl.BlockSpec((1, Cout * W1), lambda i: (0, 0)),
            ],
            out_specs=pl.BlockSpec((nb, H1, Cout * W1), lambda i: (i, 0, 0)),
            scratch_shapes=[pltpu.VMEM((nb, H1 + 2, Cmid * W1), cdt)],
        ),
        compiler_params=pltpu.CompilerParams(
            dimension_semantics=("parallel",),
            vmem_limit_bytes=vmem_limit_bytes),
    )(x_rows, B1, b1_row, B2, b2_row)

    # (N, H1, Cout*W1) -> (N, Cout, H1, W1); only a non-minor-dim transpose.
    return jnp.transpose(out_rows.reshape(N, H1, Cout, W1), (0, 2, 1, 3))


def _reference(x_nchw, w1_oihw, b1, w2_oihw, b2, *, stride, use_act):
    """Pure-JAX reference matching the PyTorch module semantics (NCHW)."""
    y = jax.lax.conv_general_dilated(
        x_nchw, w1_oihw, (stride, stride), ((1, 1), (1, 1)),
        dimension_numbers=("NCHW", "OIHW", "NCHW"))
    y = jnp.tanh(y + b1[None, :, None, None])
    y = jax.lax.conv_general_dilated(
        y, w2_oihw, (1, 1), ((1, 1), (1, 1)),
        dimension_numbers=("NCHW", "OIHW", "NCHW"))
    y = y + b2[None, :, None, None]
    if use_act:
        y = jnp.tanh(y)
    return y


if __name__ == "__main__":
    # Module config: ReluConvBlock(in_features=4, mid_features=8) -> out_features=8
    N, Cin, H, W = 2, 4, 16, 16
    Cmid, Cout = 8, 8
    stride, use_act = 1, True

    key = jax.random.PRNGKey(0)
    kx, kw1, kb1, kw2, kb2 = jax.random.split(key, 5)

    x = jax.random.normal(kx, (N, Cin, H, W), jnp.float32)
    # Deterministic synthetic weights in PyTorch OIHW layout, then convert to HWIO.
    w1_oihw = jax.random.normal(kw1, (Cmid, Cin, 3, 3), jnp.float32) * 0.1
    b1 = jax.random.normal(kb1, (Cmid,), jnp.float32) * 0.1
    w2_oihw = jax.random.normal(kw2, (Cout, Cmid, 3, 3), jnp.float32) * 0.1
    b2 = jax.random.normal(kb2, (Cout,), jnp.float32) * 0.1

    w1_hwio = jnp.transpose(w1_oihw, (2, 3, 1, 0))  # (3,3,Cin,Cmid)
    w2_hwio = jnp.transpose(w2_oihw, (2, 3, 1, 0))  # (3,3,Cmid,Cout)

    fwd = jax.jit(functools.partial(relu_conv_block, stride=stride, use_act=use_act))
    out = jax.block_until_ready(fwd(x, w1_hwio, b1, w2_hwio, b2))

    ref = jax.block_until_ready(
        _reference(x, w1_oihw, b1, w2_oihw, b2, stride=stride, use_act=use_act))

    np.testing.assert_allclose(np.asarray(out), np.asarray(ref),
                               atol=1e-4, rtol=1e-4)
    print("KERNEL_OK")
</pallas_src>

<mosaic_0001>
module attributes {stable_mosaic.version = 11 : i64} {
  func.func @_relu_conv_block_kernel(%arg0: i32, %arg1: memref<2x18x64xf32, #tpu.memory_space<vmem>>, %arg2: memref<192x128xf32, #tpu.memory_space<vmem>>, %arg3: memref<1x128xf32, #tpu.memory_space<vmem>>, %arg4: memref<384x128xf32, #tpu.memory_space<vmem>>, %arg5: memref<1x128xf32, #tpu.memory_space<vmem>>, %arg6: memref<2x16x128xf32, #tpu.memory_space<vmem>>, %arg7: memref<2x18x128xf32, #tpu.memory_space<vmem>>) attributes {dimension_semantics = [#tpu.dimension_semantics<parallel>], iteration_bounds = array<i64: 1>, scalar_prefetch = 0 : i64, scratch_operands = 1 : i64, tpu.core_type = #tpu.core_type<tc>, window_params = [{transform_indices = @transform_0, window_bounds = array<i64: 2, 18, 64>}, {pipeline_mode = #tpu.pipeline_mode<synchronous>, transform_indices = @transform_1, window_bounds = array<i64: 192, 128>}, {pipeline_mode = #tpu.pipeline_mode<synchronous>, transform_indices = @transform_2, window_bounds = array<i64: 1, 128>}, {pipeline_mode = #tpu.pipeline_mode<synchronous>, transform_indices = @transform_3, window_bounds = array<i64: 384, 128>}, {pipeline_mode = #tpu.pipeline_mode<synchronous>, transform_indices = @transform_4, window_bounds = array<i64: 1, 128>}, {transform_indices = @transform_5, window_bounds = array<i64: 2, 16, 128>}]} {
    %c0 = arith.constant 0 : index
    %c0_0 = arith.constant 0 : index
    %c0_1 = arith.constant 0 : index
    %0 = vector.load %arg1[%c0, %c0_0, %c0_1] : memref<2x18x64xf32, #tpu.memory_space<vmem>>, vector<2x18x64xf32>
    %1 = vector.extract_strided_slice %0 {offsets = [0, 0, 0], sizes = [2, 16, 64], strides = [1, 1, 1]} : vector<2x18x64xf32> to vector<2x16x64xf32>
    %2 = vector.extract_strided_slice %0 {offsets = [0, 1, 0], sizes = [2, 16, 64], strides = [1, 1, 1]} : vector<2x18x64xf32> to vector<2x16x64xf32>
    %3 = vector.extract_strided_slice %0 {offsets = [0, 2, 0], sizes = [2, 16, 64], strides = [1, 1, 1]} : vector<2x18x64xf32> to vector<2x16x64xf32>
    %4 = tpu.concatenate %1, %2, %3 in 2 : vector<2x16x64xf32>, vector<2x16x64xf32>, vector<2x16x64xf32> -> vector<2x16x192xf32>
    %5 = vector.shape_cast %4 : vector<2x16x192xf32> to vector<32x192xf32>
    %c0_2 = arith.constant 0 : index
    %c0_3 = arith.constant 0 : index
    %6 = vector.load %arg2[%c0_2, %c0_3] : memref<192x128xf32, #tpu.memory_space<vmem>>, vector<192x128xf32>
    %cst = arith.constant dense<0.000000e+00> : vector<32x128xf32>
    %7 = tpu.matmul %5, %6, %cst {dimension_numbers = #tpu.dot_dimension_numbers<[1], [0], [0], [1], [0, 0, 1, 1], [], []>} : vector<32x192xf32>, vector<192x128xf32>, vector<32x128xf32> -> vector<32x128xf32>
    %c0_4 = arith.constant 0 : index
    %c0_5 = arith.constant 0 : index
    %8 = vector.load %arg3[%c0_4, %c0_5] : memref<1x128xf32, #tpu.memory_space<vmem>>, vector<1x128xf32>
    %9 = vector.broadcast %8 : vector<1x128xf32> to vector<32x128xf32>
    %10 = arith.addf %7, %9 : vector<32x128xf32>
    %11 = math.tanh %10 : vector<32x128xf32>
    %cst_6 = arith.constant 0.000000e+00 : f32
    %12 = vector.broadcast %cst_6 : f32 to vector<2x1x128xf32>
    %c0_7 = arith.constant 0 : index
    %c0_8 = arith.constant 0 : index
    %c0_9 = arith.constant 0 : index
    %13 = vector.load %arg7[%c0_7, %c0_8, %c0_9] : memref<2x18x128xf32, #tpu.memory_space<vmem>>, vector<2x1x128xf32>
    tpu.vector_store %arg7[%c0_7, %c0_8, %c0_9], %12 {strides = array<i32>} : memref<2x18x128xf32, #tpu.memory_space<vmem>>, vector<2x1x128xf32>,
    %cst_10 = arith.constant 0.000000e+00 : f32
    %14 = vector.broadcast %cst_10 : f32 to vector<2x1x128xf32>
    %c0_11 = arith.constant 0 : index
    %c17 = arith.constant 17 : index
    %c0_12 = arith.constant 0 : index
    %15 = vector.load %arg7[%c0_11, %c17, %c0_12] : memref<2x18x128xf32, #tpu.memory_space<vmem>>, vector<2x1x128xf32>
    tpu.vector_store %arg7[%c0_11, %c17, %c0_12], %14 {strides = array<i32>} : memref<2x18x128xf32, #tpu.memory_space<vmem>>, vector<2x1x128xf32>,
    %16 = vector.shape_cast %11 : vector<32x128xf32> to vector<2x16x128xf32>
    %c0_13 = arith.constant 0 : index
    %c1 = arith.constant 1 : index
    %c0_14 = arith.constant 0 : index
    %17 = vector.load %arg7[%c0_13, %c1, %c0_14] : memref<2x18x128xf32, #tpu.memory_space<vmem>>, vector<2x16x128xf32>
    tpu.vector_store %arg7[%c0_13, %c1, %c0_14], %16 {strides = array<i32>} : memref<2x18x128xf32, #tpu.memory_space<vmem>>, vector<2x16x128xf32>,
    %c0_15 = arith.constant 0 : index
    %c0_16 = arith.constant 0 : index
    %c0_17 = arith.constant 0 : index
    %18 = vector.load %arg7[%c0_15, %c0_16, %c0_17] : memref<2x18x128xf32, #tpu.memory_space<vmem>>, vector<2x18x128xf32>
    %19 = vector.extract_strided_slice %18 {offsets = [0, 0, 0], sizes = [2, 16, 128], strides = [1, 1, 1]} : vector<2x18x128xf32> to vector<2x16x128xf32>
    %20 = vector.extract_strided_slice %18 {offsets = [0, 1, 0], sizes = [2, 16, 128], strides = [1, 1, 1]} : vector<2x18x128xf32> to vector<2x16x128xf32>
    %21 = vector.extract_strided_slice %18 {offsets = [0, 2, 0], sizes = [2, 16, 128], strides = [1, 1, 1]} : vector<2x18x128xf32> to vector<2x16x128xf32>
    %22 = tpu.concatenate %19, %20, %21 in 2 : vector<2x16x128xf32>, vector<2x16x128xf32>, vector<2x16x128xf32> -> vector<2x16x384xf32>
    %23 = vector.shape_cast %22 : vector<2x16x384xf32> to vector<32x384xf32>
    %c0_18 = arith.constant 0 : index
    %c0_19 = arith.constant 0 : index
    %24 = vector.load %arg4[%c0_18, %c0_19] : memref<384x128xf32, #tpu.memory_space<vmem>>, vector<384x128xf32>
    %cst_20 = arith.constant dense<0.000000e+00> : vector<32x128xf32>
    %25 = tpu.matmul %23, %24, %cst_20 {dimension_numbers = #tpu.dot_dimension_numbers<[1], [0], [0], [1], [0, 0, 1, 1], [], []>} : vector<32x384xf32>, vector<384x128xf32>, vector<32x128xf32> -> vector<32x128xf32>
    %c0_21 = arith.constant 0 : index
    %c0_22 = arith.constant 0 : index
    %26 = vector.load %arg5[%c0_21, %c0_22] : memref<1x128xf32, #tpu.memory_space<vmem>>, vector<1x128xf32>
    %27 = vector.broadcast %26 : vector<1x128xf32> to vector<32x128xf32>
    %28 = arith.addf %25, %27 : vector<32x128xf32>
    %29 = math.tanh %28 : vector<32x128xf32>
    %30 = vector.shape_cast %29 : vector<32x128xf32> to vector<2x16x128xf32>
    %c0_23 = arith.constant 0 : index
    %c0_24 = arith.constant 0 : index
    %c0_25 = arith.constant 0 : index
    %31 = vector.load %arg6[%c0_23, %c0_24, %c0_25] : memref<2x16x128xf32, #tpu.memory_space<vmem>>, vector<2x16x128xf32>
    tpu.vector_store %arg6[%c0_23, %c0_24, %c0_25], %30 {strides = array<i32>} : memref<2x16x128xf32, #tpu.memory_space<vmem>>, vector<2x16x128xf32>,
    return
  }
  func.func @transform_0(%arg0: i32) -> (i32, i32, i32) {
    %c0_i32 = arith.constant 0 : i32
    %c0_i32_0 = arith.constant 0 : i32
    %c0_i32_1 = arith.constant 0 : i32
    return %arg0, %c0_i32, %c0_i32_0 : i32, i32, i32
  }
  func.func @transform_1(%arg0: i32) -> (i32, i32) {
    %c0_i32 = arith.constant 0 : i32
    %c0_i32_0 = arith.constant 0 : i32
    %c0_i32_1 = arith.constant 0 : i32
    return %c0_i32, %c0_i32_0 : i32, i32
  }
  func.func @transform_2(%arg0: i32) -> (i32, i32) {
    %c0_i32 = arith.constant 0 : i32
    %c0_i32_0 = arith.constant 0 : i32
    %c0_i32_1 = arith.constant 0 : i32
    return %c0_i32, %c0_i32_0 : i32, i32
  }
  func.func @transform_3(%arg0: i32) -> (i32, i32) {
    %c0_i32 = arith.constant 0 : i32
    %c0_i32_0 = arith.constant 0 : i32
    %c0_i32_1 = arith.constant 0 : i32
    return %c0_i32, %c0_i32_0 : i32, i32
  }
  func.func @transform_4(%arg0: i32) -> (i32, i32) {
    %c0_i32 = arith.constant 0 : i32
    %c0_i32_0 = arith.constant 0 : i32
    %c0_i32_1 = arith.constant 0 : i32
    return %c0_i32, %c0_i32_0 : i32, i32
  }
  func.func @transform_5(%arg0: i32) -> (i32, i32, i32) {
    %c0_i32 = arith.constant 0 : i32
    %c0_i32_0 = arith.constant 0 : i32
    %c0_i32_1 = arith.constant 0 : i32
    return %arg0, %c0_i32, %c0_i32_0 : i32, i32, i32
  }
}

</mosaic_0001>

<llo_original>
// kernel: relu_conv_block.1
$region0: #{relu_conv_block.1}
  #allocation0 [shape = 'u32[]', space=smem, size = 0x4, offset = 0x4, fixed_abs, tag = 'smem constant byte address 0x4 - core index']
  #allocation1 [shape = 'u32[144,128]{1,0:T(1,128)}', space=vmem, size = 0x12000, scoped, tag = 'internal scratch']
  #allocation2 [shape = 'f32[2,18,128]{2,1,0:T(8,128)}', space=vmem, size = 0x6000, scoped, tag = 'scratch operand']
  %s0 = inlined_call_operand.vmem [shape: f32[2,18,64], index: 0, kind: input, shape index: {}]
  %s1 = inlined_call_operand.vmem [shape: f32[192,128], index: 1, kind: input, shape index: {}]
  %s2 = inlined_call_operand.vmem [shape: f32[1,128], index: 2, kind: input, shape index: {}]
  %s3 = inlined_call_operand.vmem [shape: f32[384,128], index: 3, kind: input, shape index: {}]
  %s4 = inlined_call_operand.vmem [shape: f32[1,128], index: 4, kind: input, shape index: {}]
  %s5 = inlined_call_operand.vmem [shape: f32[2,16,128], index: 5, kind: output, shape index: {}]
  %s6 = sld [smem:[#allocation0]]
  $region30: #{relu_conv_block.1} parent=0
    _
  %s8 = ssub.s32 1, %s6
  %s9 = scalar_select 0, %s8, %s6
  // Predicated region
  $region2: #{relu_conv_block.1} parent=0 // pred_check
    _
  $region3: #{relu_conv_block.1} parent=0 // pred_check_branch
    %11 = sbr.rel (0) target = $region5
  $region4: #{relu_conv_block.1} parent=0 // pred_region
    _
  $region5: #{relu_conv_block.1} parent=0 // pred_fallthru
    _
  // Predicated region
  $region6: #{relu_conv_block.1} parent=0 // pred_check
    _
  $region7: #{relu_conv_block.1} parent=0 // pred_check_branch
    %13 = sbr.rel (0) target = $region9
  $region8: #{relu_conv_block.1} parent=0 // pred_region
    _
  $region9: #{relu_conv_block.1} parent=0 // pred_fallthru
    _
  // Predicated region
  $region10: #{relu_conv_block.1} parent=0 // pred_check
    _
  $region11: #{relu_conv_block.1} parent=0 // pred_check_branch
    %15 = sbr.rel (0) target = $region13
  $region12: #{relu_conv_block.1} parent=0 // pred_region
    _
  $region13: #{relu_conv_block.1} parent=0 // pred_fallthru
    _
  // Predicated region
  $region14: #{relu_conv_block.1} parent=0 // pred_check
    _
  $region15: #{relu_conv_block.1} parent=0 // pred_check_branch
    %17 = sbr.rel (0) target = $region17
  $region16: #{relu_conv_block.1} parent=0 // pred_region
    _
  $region17: #{relu_conv_block.1} parent=0 // pred_fallthru
    _
  // Predicated region
  $region18: #{relu_conv_block.1} parent=0 // pred_check
    _
  $region19: #{relu_conv_block.1} parent=0 // pred_check_branch
    %19 = sbr.rel (0) target = $region21
  $region20: #{relu_conv_block.1} parent=0 // pred_region
    _
  $region21: #{relu_conv_block.1} parent=0 // pred_fallthru
    _
  %v20 = vld [vmem:[%s0] sm:$0xff]
  %v21 = vld [vmem:[%s0 + $0x8] sm:$0xff]
  %v22 = vld [vmem:[%s0 + $0x10] sm:$0x3]
  %v23 = vld [vmem:[%s0 + $0x18] sm:$0xff]
  %v24 = vld [vmem:[%s0 + $0x20] sm:$0xff]
  %v25 = vld [vmem:[%s0 + $0x28] sm:$0x3]
  %vm32 = vcmask 1046528
  %v33 = vrot.slane %v20, 1
  %v34 = vrot.slane %v21, 1
  %v35 = vsel %vm32, %v33, %v34
  %v36 = vrot.slane %v22, 1
  %v37 = vsel %vm32, %v34, %v36
  %v38 = vrot.slane %v23, 1
  %v39 = vrot.slane %v24, 1
  %v40 = vsel %vm32, %v38, %v39
  %v41 = vrot.slane %v25, 1
  %v42 = vsel %vm32, %v39, %v41
  %43 = vrot.lane.b32.xlu0 %v35, 64
  %v44 = vpop.permute.xlu0 %43
  %45 = vrot.lane.b32.xlu0 %v37, 64
  %v46 = vpop.permute.xlu0 %45
  %47 = vrot.lane.b32.xlu0 %v40, 64
  %v48 = vpop.permute.xlu0 %47
  %49 = vrot.lane.b32.xlu0 %v42, 64
  %v50 = vpop.permute.xlu0 %49
  %vm55 = vcmask 1045504
  %v56 = vrot.slane %v20, 2
  %v57 = vrot.slane %v21, 2
  %v58 = vsel %vm55, %v56, %v57
  %v59 = vrot.slane %v22, 2
  %v60 = vsel %vm55, %v57, %v59
  %v61 = vrot.slane %v23, 2
  %v62 = vrot.slane %v24, 2
  %v63 = vsel %vm55, %v61, %v62
  %v64 = vrot.slane %v25, 2
  %v65 = vsel %vm55, %v62, %v64
  %vm66 = vcmask 523264
  %v67 = vsel %vm66, %v20, %v44
  %v68 = vsel %vm66, %v21, %v46
  %v69 = vsel %vm66, %v23, %v48
  %v70 = vsel %vm66, %v24, %v50
  %v71 = vld [vmem:[%s1] sm:$0xff]
  %v72 = vld [vmem:[%s1 + $0x8] sm:$0xff]
  %v73 = vld [vmem:[%s1 + $0x10] sm:$0xff]
  %v74 = vld [vmem:[%s1 + $0x18] sm:$0xff]
  %v75 = vld [vmem:[%s1 + $0x20] sm:$0xff]
  %v76 = vld [vmem:[%s1 + $0x28] sm:$0xff]
  %v77 = vld [vmem:[%s1 + $0x30] sm:$0xff]
  %v78 = vld [vmem:[%s1 + $0x38] sm:$0xff]
  %v79 = vld [vmem:[%s1 + $0x40] sm:$0xff]
  %v80 = vld [vmem:[%s1 + $0x48] sm:$0xff]
  %v81 = vld [vmem:[%s1 + $0x50] sm:$0xff]
  %v82 = vld [vmem:[%s1 + $0x58] sm:$0xff]
  %v83 = vld [vmem:[%s1 + $0x60] sm:$0xff]
  %v84 = vld [vmem:[%s1 + $0x68] sm:$0xff]
  %v85 = vld [vmem:[%s1 + $0x70] sm:$0xff]
  %v86 = vld [vmem:[%s1 + $0x78] sm:$0xff]
  %v87 = vld [vmem:[%s1 + $0x80] sm:$0xff]
  %v88 = vld [vmem:[%s1 + $0x88] sm:$0xff]
  %v89 = vld [vmem:[%s1 + $0x90] sm:$0xff]
  %v90 = vld [vmem:[%s1 + $0x98] sm:$0xff]
  %v91 = vld [vmem:[%s1 + $0xa0] sm:$0xff]
  %v92 = vld [vmem:[%s1 + $0xa8] sm:$0xff]
  %v93 = vld [vmem:[%s1 + $0xb0] sm:$0xff]
  %v94 = vld [vmem:[%s1 + $0xb8] sm:$0xff]
  %v95 = vld [vmem:[%s2] sm:$0x1]
  %v97 = vlaneseq
  %v98 = vshrl.u32 %v97, 7
  %v99 = vsub.s32 0, %v98
  %v100 = vrot.slane %v95, %v99
  %v102 = vsel %vm66, %v58, 0
  %v104 = vsel %vm66, %v60, 0
  %v106 = vsel %vm66, %v63, 0
  %v108 = vsel %vm66, %v65, 0
  %110 = vmatprep.subr.mxu0 0.0
  %111 = vmatpush1.msra.mxu0 %v71
  %112 = vmatprep.subr.mxu0 0.0
  %113 = vmatpush1.msra.mxu0 %v72
  %114 = vmatprep.subr.mxu0 0.0
  %115 = vmatpush1.msra.mxu0 %v73
  %116 = vmatprep.subr.mxu0 0.0
  %117 = vmatpush1.msra.mxu0 %v74
  %118 = vmatprep.subr.mxu0 0.0
  %119 = vmatpush1.msra.mxu0 %v75
  %120 = vmatprep.subr.mxu0 0.0
  %121 = vmatpush1.msra.mxu0 %v76
  %122 = vmatprep.subr.mxu0 0.0
  %123 = vmatpush1.msra.mxu0 %v77
  %124 = vmatprep.subr.mxu0 0.0
  %125 = vmatpush1.msra.mxu0 %v78
  %126 = vmatprep.subr.mxu0 0.0
  %127 = vmatpush1.msra.mxu0 %v79
  %128 = vmatprep.subr.mxu0 0.0
  %129 = vmatpush1.msra.mxu0 %v80
  %130 = vmatprep.subr.mxu0 0.0
  %131 = vmatpush1.msra.mxu0 %v81
  %132 = vmatprep.subr.mxu0 0.0
  %133 = vmatpush1.msra.mxu0 %v82
  %134 = vmatprep.subr.mxu0 0.0
  %135 = vmatpush1.msra.mxu0 %v83
  %136 = vmatprep.subr.mxu0 0.0
  %137 = vmatpush1.msra.mxu0 %v84
  %138 = vmatprep.subr.mxu0 0.0
  %139 = vmatpush1.msra.mxu0 %v85
  %140 = vmatprep.subr.mxu0 0.0
  %141 = vmatpush1.msra.mxu0 %v86
  %142 = vmatprep.subr.mxu0 0.0
  %143 = vmatpush1.msra.mxu0 %v87
  %144 = vmatprep.subr.mxu0 0.0
  %145 = vmatpush1.msra.mxu0 %v88
  %146 = vmatprep.subr.mxu0 0.0
  %147 = vmatpush1.msra.mxu0 %v89
  %148 = vmatprep.subr.mxu0 0.0
  %149 = vmatpush1.msra.mxu0 %v90
  %150 = vmatprep.subr.mxu0 0.0
  %151 = vmatpush1.msra.mxu0 %v91
  %152 = vmatprep.subr.mxu0 0.0
  %153 = vmatpush1.msra.mxu0 %v92
  %154 = vmatprep.subr.mxu0 0.0
  %155 = vmatpush1.msra.mxu0 %v93
  %156 = vmatprep.subr.mxu0 0.0
  %157 = vmatpush1.msra.mxu0 %v94
  %158 = vmatprep.subr.mxu0 0.0
  %159 = vmatpush1.msra.mxu0 0.0
  %160 = vmatprep.subr.mxu0 0.0
  %161 = vmatpush1.msra.mxu0 0.0
  %162 = vmatprep.subr.mxu0 0.0
  %163 = vmatpush1.msra.mxu0 0.0
  %164 = vmatprep.subr.mxu0 0.0
  %165 = vmatpush1.msra.mxu0 0.0
  %166 = vmatprep.subr.mxu0 0.0
  %167 = vmatpush1.msra.mxu0 0.0
  %168 = vmatprep.subr.mxu0 0.0
  %169 = vmatpush1.msra.mxu0 0.0
  %170 = vmatprep.subr.mxu0 0.0
  %171 = vmatpush1.msra.mxu0 0.0
  %172 = vmatprep.subr.mxu0 0.0
  %173 = vmatpush1.msra.mxu0 0.0
  %174 = vmatprep.mubr.f32.mxu0 %v102
  %175 = vmatmul.mubr.f32.gmra.mrb[0].mxu0 %v67
  %v176 = vpop.f32.mrb[0].mxu0
  %v177 = vadd.f32 %v100, %v176
  %v178 = vpop.f32.mrb[0].mxu0
  %179 = vmatprep.mubr.f32.mxu0 %v104
  %180 = vmatmul.mubr.f32.gmra.mrb[0].mxu0 %v68
  %v181 = vpop.f32.mrb[0].mxu0
  %v182 = vadd.f32 %v100, %v181
  %v183 = vpop.f32.mrb[0].mxu0
  %184 = vmatprep.mubr.f32.mxu0 %v106
  %185 = vmatmul.mubr.f32.gmra.mrb[0].mxu0 %v69
  %v186 = vpop.f32.mrb[0].mxu0
  %v187 = vadd.f32 %v100, %v186
  %v188 = vpop.f32.mrb[0].mxu0
  %189 = vmatprep.mubr.f32.mxu0 %v108
  %190 = vmatmul.mubr.f32.gmra.mrb[0].mxu0 %v70
  %v191 = vpop.f32.mrb[0].mxu0
  %v192 = vadd.f32 %v100, %v191
  %v193 = vpop.f32.mrb[0].mxu0
  %194 = vdwg.mxu0
  %v195 = vtanh.pop %v177
  %v196 = vtanh.pop %v182
  %v197 = vtanh.pop %v187
  %v198 = vtanh.pop %v192
  %199 = vst [vmem:[#allocation2] sm:$0x1] 0.0
  %200 = vst [vmem:[#allocation2 + $0x18] sm:$0x1] 0.0
  %201 = vst [vmem:[#allocation2 + $0x11] sm:$0x1] 0.0
  %202 = vst [vmem:[#allocation2 + $0x29] sm:$0x1] 0.0
  %203 = vst [vmem:[#allocation2 + $0x1] sm:$0xff] %v195
  %204 = vst [vmem:[#allocation2 + $0x9] sm:$0xff] %v196
  %205 = vst [vmem:[#allocation2 + $0x19] sm:$0xff] %v197
  %206 = vst [vmem:[#allocation2 + $0x21] sm:$0xff] %v198
  %v207 = vld [vmem:[#allocation2] sm:$0xff]
  %v208 = vld [vmem:[#allocation2 + $0x8] sm:$0xff]
  %v209 = vld [vmem:[#allocation2 + $0x10] sm:$0x3]
  %v210 = vld [vmem:[#allocation2 + $0x18] sm:$0xff]
  %v211 = vld [vmem:[#allocation2 + $0x20] sm:$0xff]
  %v212 = vld [vmem:[#allocation2 + $0x28] sm:$0x3]
  %v219 = vrot.slane %v207, 1
  %v220 = vrot.slane %v208, 1
  %v221 = vsel %vm32, %v219, %v220
  %v222 = vrot.slane %v209, 1
  %v223 = vsel %vm32, %v220, %v222
  %v224 = vrot.slane %v210, 1
  %v225 = vrot.slane %v211, 1
  %v226 = vsel %vm32, %v224, %v225
  %v227 = vrot.slane %v212, 1
  %v228 = vsel %vm32, %v225, %v227
  %v233 = vrot.slane %v207, 2
  %v234 = vrot.slane %v208, 2
  %v235 = vsel %vm55, %v233, %v234
  %v236 = vrot.slane %v209, 2
  %v237 = vsel %vm55, %v234, %v236
  %v238 = vrot.slane %v210, 2
  %v239 = vrot.slane %v211, 2
  %v240 = vsel %vm55, %v238, %v239
  %v241 = vrot.slane %v212, 2
  %v242 = vsel %vm55, %v239, %v241
  %v247 = vld [vmem:[%s3] sm:$0xff]
  %v248 = vld [vmem:[%s3 + $0x8] sm:$0xff]
  %v249 = vld [vmem:[%s3 + $0x10] sm:$0xff]
  %v250 = vld [vmem:[%s3 + $0x18] sm:$0xff]
  %v251 = vld [vmem:[%s3 + $0x20] sm:$0xff]
  %v252 = vld [vmem:[%s3 + $0x28] sm:$0xff]
  %v253 = vld [vmem:[%s3 + $0x30] sm:$0xff]
  %v254 = vld [vmem:[%s3 + $0x38] sm:$0xff]
  %v255 = vld [vmem:[%s3 + $0x40] sm:$0xff]
  %v256 = vld [vmem:[%s3 + $0x48] sm:$0xff]
  %v257 = vld [vmem:[%s3 + $0x50] sm:$0xff]
  %v258 = vld [vmem:[%s3 + $0x58] sm:$0xff]
  %v259 = vld [vmem:[%s3 + $0x60] sm:$0xff]
  %v260 = vld [vmem:[%s3 + $0x68] sm:$0xff]
  %v261 = vld [vmem:[%s3 + $0x70] sm:$0xff]
  %v262 = vld [vmem:[%s3 + $0x78] sm:$0xff]
  %v263 = vld [vmem:[%s3 + $0x80] sm:$0xff]
  %v264 = vld [vmem:[%s3 + $0x88] sm:$0xff]
  %v265 = vld [vmem:[%s3 + $0x90] sm:$0xff]
  %v266 = vld [vmem:[%s3 + $0x98] sm:$0xff]
  %v267 = vld [vmem:[%s3 + $0xa0] sm:$0xff]
  %v268 = vld [vmem:[%s3 + $0xa8] sm:$0xff]
  %v269 = vld [vmem:[%s3 + $0xb0] sm:$0xff]
  %v270 = vld [vmem:[%s3 + $0xb8] sm:$0xff]
  %v271 = vld [vmem:[%s3 + $0xc0] sm:$0xff]
  %v272 = vld [vmem:[%s3 + $0xc8] sm:$0xff]
  %v273 = vld [vmem:[%s3 + $0xd0] sm:$0xff]
  %v274 = vld [vmem:[%s3 + $0xd8] sm:$0xff]
  %v275 = vld [vmem:[%s3 + $0xe0] sm:$0xff]
  %v276 = vld [vmem:[%s3 + $0xe8] sm:$0xff]
  %v277 = vld [vmem:[%s3 + $0xf0] sm:$0xff]
  %v278 = vld [vmem:[%s3 + $0xf8] sm:$0xff]
  %v279 = vld [vmem:[%s3 + $0x100] sm:$0xff]
  %v280 = vld [vmem:[%s3 + $0x108] sm:$0xff]
  %v281 = vld [vmem:[%s3 + $0x110] sm:$0xff]
  %v282 = vld [vmem:[%s3 + $0x118] sm:$0xff]
  %v283 = vld [vmem:[%s3 + $0x120] sm:$0xff]
  %v284 = vld [vmem:[%s3 + $0x128] sm:$0xff]
  %v285 = vld [vmem:[%s3 + $0x130] sm:$0xff]
  %v286 = vld [vmem:[%s3 + $0x138] sm:$0xff]
  %v287 = vld [vmem:[%s3 + $0x140] sm:$0xff]
  %v288 = vld [vmem:[%s3 + $0x148] sm:$0xff]
  %v289 = vld [vmem:[%s3 + $0x150] sm:$0xff]
  %v290 = vld [vmem:[%s3 + $0x158] sm:$0xff]
  %v291 = vld [vmem:[%s3 + $0x160] sm:$0xff]
  %v292 = vld [vmem:[%s3 + $0x168] sm:$0xff]
  %v293 = vld [vmem:[%s3 + $0x170] sm:$0xff]
  %v294 = vld [vmem:[%s3 + $0x178] sm:$0xff]
  %v295 = vld [vmem:[%s4] sm:$0x1]
  %v297 = vlaneseq
  %v298 = vshrl.u32 %v297, 7
  %v299 = vsub.s32 0, %v298
  %v300 = vrot.slane %v295, %v299
  %302 = vmatprep.subr.mxu0 0.0
  %303 = vmatpush1.msra.mxu0 %v247
  %304 = vmatprep.subr.mxu0 0.0
  %305 = vmatpush1.msra.mxu0 %v248
  %306 = vmatprep.subr.mxu0 0.0
  %307 = vmatpush1.msra.mxu0 %v249
  %308 = vmatprep.subr.mxu0 0.0
  %309 = vmatpush1.msra.mxu0 %v250
  %310 = vmatprep.subr.mxu0 0.0
  %311 = vmatpush1.msra.mxu0 %v251
  %312 = vmatprep.subr.mxu0 0.0
  %313 = vmatpush1.msra.mxu0 %v252
  %314 = vmatprep.subr.mxu0 0.0
  %315 = vmatpush1.msra.mxu0 %v253
  %316 = vmatprep.subr.mxu0 0.0
  %317 = vmatpush1.msra.mxu0 %v254
  %318 = vmatprep.subr.mxu0 0.0
  %319 = vmatpush1.msra.mxu0 %v255
  %320 = vmatprep.subr.mxu0 0.0
  %321 = vmatpush1.msra.mxu0 %v256
  %322 = vmatprep.subr.mxu0 0.0
  %323 = vmatpush1.msra.mxu0 %v257
  %324 = vmatprep.subr.mxu0 0.0
  %325 = vmatpush1.msra.mxu0 %v258
  %326 = vmatprep.subr.mxu0 0.0
  %327 = vmatpush1.msra.mxu0 %v259
  %328 = vmatprep.subr.mxu0 0.0
  %329 = vmatpush1.msra.mxu0 %v260
  %330 = vmatprep.subr.mxu0 0.0
  %331 = vmatpush1.msra.mxu0 %v261
  %332 = vmatprep.subr.mxu0 0.0
  %333 = vmatpush1.msra.mxu0 %v262
  %334 = vmatprep.subr.mxu0 0.0
  %335 = vmatpush1.msra.mxu0 %v263
  %336 = vmatprep.subr.mxu0 0.0
  %337 = vmatpush1.msra.mxu0 %v264
  %338 = vmatprep.subr.mxu0 0.0
  %339 = vmatpush1.msra.mxu0 %v265
  %340 = vmatprep.subr.mxu0 0.0
  %341 = vmatpush1.msra.mxu0 %v266
  %342 = vmatprep.subr.mxu0 0.0
  %343 = vmatpush1.msra.mxu0 %v267
  %344 = vmatprep.subr.mxu0 0.0
  %345 = vmatpush1.msra.mxu0 %v268
  %346 = vmatprep.subr.mxu0 0.0
  %347 = vmatpush1.msra.mxu0 %v269
  %348 = vmatprep.subr.mxu0 0.0
  %349 = vmatpush1.msra.mxu0 %v270
  %350 = vmatprep.subr.mxu0 0.0
  %351 = vmatpush1.msra.mxu0 %v271
  %352 = vmatprep.subr.mxu0 0.0
  %353 = vmatpush1.msra.mxu0 %v272
  %354 = vmatprep.subr.mxu0 0.0
  %355 = vmatpush1.msra.mxu0 %v273
  %356 = vmatprep.subr.mxu0 0.0
  %357 = vmatpush1.msra.mxu0 %v274
  %358 = vmatprep.subr.mxu0 0.0
  %359 = vmatpush1.msra.mxu0 %v275
  %360 = vmatprep.subr.mxu0 0.0
  %361 = vmatpush1.msra.mxu0 %v276
  %362 = vmatprep.subr.mxu0 0.0
  %363 = vmatpush1.msra.mxu0 %v277
  %364 = vmatprep.subr.mxu0 0.0
  %365 = vmatpush1.msra.mxu0 %v278
  %366 = vmatprep.mubr.f32.mxu0 %v221
  %367 = vmatmul.mubr.f32.gmra.mrb[0].mxu0 %v207
  %v368 = vpop.f32.mrb[0].mxu0
  %v369 = vadd.f32 %v300, %v368
  %v370 = vpop.f32.mrb[0].mxu0
  %371 = vmatprep.mubr.f32.mxu0 %v223
  %372 = vmatmul.mubr.f32.gmra.mrb[0].mxu0 %v208
  %v373 = vpop.f32.mrb[0].mxu0
  %v374 = vadd.f32 %v300, %v373
  %v375 = vpop.f32.mrb[0].mxu0
  %376 = vmatprep.mubr.f32.mxu0 %v226
  %377 = vmatmul.mubr.f32.gmra.mrb[0].mxu0 %v210
  %v378 = vpop.f32.mrb[0].mxu0
  %v379 = vadd.f32 %v300, %v378
  %v380 = vpop.f32.mrb[0].mxu0
  %381 = vmatprep.mubr.f32.mxu0 %v228
  %382 = vmatmul.mubr.f32.gmra.mrb[0].mxu0 %v211
  %v383 = vpop.f32.mrb[0].mxu0
  %v384 = vadd.f32 %v300, %v383
  %v385 = vpop.f32.mrb[0].mxu0
  %386 = vdwg.mxu0
  %387 = vmatprep.subr.mxu0 0.0
  %388 = vmatpush1.msra.mxu0 %v279
  %389 = vmatprep.subr.mxu0 0.0
  %390 = vmatpush1.msra.mxu0 %v280
  %391 = vmatprep.subr.mxu0 0.0
  %392 = vmatpush1.msra.mxu0 %v281
  %393 = vmatprep.subr.mxu0 0.0
  %394 = vmatpush1.msra.mxu0 %v282
  %395 = vmatprep.subr.mxu0 0.0
  %396 = vmatpush1.msra.mxu0 %v283
  %397 = vmatprep.subr.mxu0 0.0
  %398 = vmatpush1.msra.mxu0 %v284
  %399 = vmatprep.subr.mxu0 0.0
  %400 = vmatpush1.msra.mxu0 %v285
  %401 = vmatprep.subr.mxu0 0.0
  %402 = vmatpush1.msra.mxu0 %v286
  %403 = vmatprep.subr.mxu0 0.0
  %404 = vmatpush1.msra.mxu0 %v287
  %405 = vmatprep.subr.mxu0 0.0
  %406 = vmatpush1.msra.mxu0 %v288
  %407 = vmatprep.subr.mxu0 0.0
  %408 = vmatpush1.msra.mxu0 %v289
  %409 = vmatprep.subr.mxu0 0.0
  %410 = vmatpush1.msra.mxu0 %v290
  %411 = vmatprep.subr.mxu0 0.0
  %412 = vmatpush1.msra.mxu0 %v291
  %413 = vmatprep.subr.mxu0 0.0
  %414 = vmatpush1.msra.mxu0 %v292
  %415 = vmatprep.subr.mxu0 0.0
  %416 = vmatpush1.msra.mxu0 %v293
  %417 = vmatprep.subr.mxu0 0.0
  %418 = vmatpush1.msra.mxu0 %v294
  %419 = vmatprep.subr.mxu0 0.0
  %420 = vmatpush1.msra.mxu0 0.0
  %421 = vmatprep.subr.mxu0 0.0
  %422 = vmatpush1.msra.mxu0 0.0
  %423 = vmatprep.subr.mxu0 0.0
  %424 = vmatpush1.msra.mxu0 0.0
  %425 = vmatprep.subr.mxu0 0.0
  %426 = vmatpush1.msra.mxu0 0.0
  %427 = vmatprep.subr.mxu0 0.0
  %428 = vmatpush1.msra.mxu0 0.0
  %429 = vmatprep.subr.mxu0 0.0
  %430 = vmatpush1.msra.mxu0 0.0
  %431 = vmatprep.subr.mxu0 0.0
  %432 = vmatpush1.msra.mxu0 0.0
  %433 = vmatprep.subr.mxu0 0.0
  %434 = vmatpush1.msra.mxu0 0.0
  %435 = vmatprep.subr.mxu0 0.0
  %436 = vmatpush1.msra.mxu0 0.0
  %437 = vmatprep.subr.mxu0 0.0
  %438 = vmatpush1.msra.mxu0 0.0
  %439 = vmatprep.subr.mxu0 0.0
  %440 = vmatpush1.msra.mxu0 0.0
  %441 = vmatprep.subr.mxu0 0.0
  %442 = vmatpush1.msra.mxu0 0.0
  %443 = vmatprep.subr.mxu0 0.0
  %444 = vmatpush1.msra.mxu0 0.0
  %445 = vmatprep.subr.mxu0 0.0
  %446 = vmatpush1.msra.mxu0 0.0
  %447 = vmatprep.subr.mxu0 0.0
  %448 = vmatpush1.msra.mxu0 0.0
  %449 = vmatprep.subr.mxu0 0.0
  %450 = vmatpush1.msra.mxu0 0.0
  %451 = vmatprep.mubr.f32.mxu0 0.0
  %452 = vmatmul.mubr.f32.gmra.mrb[0].mxu0 %v235
  %v453 = vpop.f32.mrb[0].mxu0
  %v454 = vadd.f32 %v369, %v453
  %v455 = vpop.f32.mrb[0].mxu0
  %456 = vmatprep.mubr.f32.mxu0 0.0
  %457 = vmatmul.mubr.f32.gmra.mrb[0].mxu0 %v237
  %v458 = vpop.f32.mrb[0].mxu0
  %v459 = vadd.f32 %v374, %v458
  %v460 = vpop.f32.mrb[0].mxu0
  %461 = vmatprep.mubr.f32.mxu0 0.0
  %462 = vmatmul.mubr.f32.gmra.mrb[0].mxu0 %v240
  %v463 = vpop.f32.mrb[0].mxu0
  %v464 = vadd.f32 %v379, %v463
  %v465 = vpop.f32.mrb[0].mxu0
  %466 = vmatprep.mubr.f32.mxu0 0.0
  %467 = vmatmul.mubr.f32.gmra.mrb[0].mxu0 %v242
  %v468 = vpop.f32.mrb[0].mxu0
  %v469 = vadd.f32 %v384, %v468
  %v470 = vpop.f32.mrb[0].mxu0
  %471 = vdwg.mxu0
  %v472 = vtanh.pop %v454
  %v473 = vtanh.pop %v459
  %v474 = vtanh.pop %v464
  %v475 = vtanh.pop %v469
  %476 = vst [vmem:[%s5] sm:$0xff] %v472
  %477 = vst [vmem:[%s5 + $0x8] sm:$0xff] %v473
  %478 = vst [vmem:[%s5 + $0x10] sm:$0xff] %v474
  %479 = vst [vmem:[%s5 + $0x18] sm:$0xff] %v475
  // Predicated region
  $region22: #{relu_conv_block.1} parent=0 // pred_check
    _
  $region23: #{relu_conv_block.1} parent=0 // pred_check_branch
    %481 = sbr.rel (0) target = $region25
  $region24: #{relu_conv_block.1} parent=0 // pred_region
    _
  $region25: #{relu_conv_block.1} parent=0 // pred_fallthru
    _
  // Predicated region
  $region26: #{relu_conv_block.1} parent=0 // pred_check
    _
  $region27: #{relu_conv_block.1} parent=0 // pred_check_branch
    %483 = sbr.rel (0) target = $region29
  $region28: #{relu_conv_block.1} parent=0 // pred_region
    _
  $region29: #{relu_conv_block.1} parent=0 // pred_fallthru
    _

</llo_original>
